<compile_context>
chip_gen: v6e
topology: v6e:2x2x1
jax: 0.10.0
libtpu: 0.0.40
codegen_flags: <defaults>
</compile_context>

<pallas_src>
import functools

import jax
import jax.numpy as jnp
import numpy as np
from jax.experimental import pallas as pl
from jax.experimental.pallas import tpu as pltpu


def hpf_kernel(x0_ref, p_ref, w_ref, out_ref, *, ksize, group):
    # x0_ref : (1, C, T)             original input, one spatial tile
    # p_ref  : (1, C*KK, T)          im2col patches, row = c*KK + (dy*ksize + dx)
    # w_ref  : (group*KK, C*KK)      conv weight as a matmul matrix
    # out_ref: (1, C, T)
    C = x0_ref.shape[1]
    T = x0_ref.shape[2]
    KK = ksize * ksize
    cpg = C // group

    patches = p_ref[0].astype(jnp.float32)          # (C*KK, T)
    x0 = x0_ref[0].astype(jnp.float32)              # (C, T)
    w = w_ref[...].astype(jnp.float32)              # (group*KK, C*KK)

    # 3x3 conv (padding=1, no bias) as one small MXU matmul per tile.
    logits = jnp.dot(w, patches, preferred_element_type=jnp.float32)   # (group*KK, T)

    # Softmax over the group*KK conv-output channels (PyTorch Softmax(dim=1)),
    # with the normalization fused into the weighted sum below.
    m = jnp.max(logits, axis=0, keepdims=True)      # (1, T)
    e = jnp.exp(logits - m)                         # (group*KK, T)  unnormalized probs
    den = jnp.sum(e, axis=0, keepdims=True)         # (1, T)

    # Unnormalized group-wise weighted sum over the 9 kernel taps:
    #   num[c, t] = sum_k patches[c*KK + k, t] * e[(c // cpg)*KK + k, t]
    num = jnp.sum(
        patches.reshape(group, cpg, KK, T) * e.reshape(group, 1, KK, T),
        axis=2,
    ).reshape(C, T)

    inv = pl.reciprocal(den, approx=False)          # exact 1/den, one per pixel column
    out_ref[0] = (x0 - num * inv).astype(out_ref.dtype)


def _pick_tile(hw, target):
    """Largest multiple of 128 that divides hw and is <= target (fallback: full hw)."""
    if hw <= 128 or hw % 128 != 0:
        return hw
    t = min((target // 128) * 128, hw)
    t = max(t, 128)
    while hw % t != 0:
        t -= 128
    return t


def hpf_forward(x0, conv_w, *, ksize=3, group=3, tile_target=4096):
    """x0: (N, C, H, W); conv_w: (group*ksize*ksize, C, ksize, ksize)."""
    N, C, H, W = x0.shape
    KK = ksize * ksize
    pad = ksize // 2
    HW = H * W

    # im2col done HBM-side by XLA; Pallas DMAs lane-dense (C*KK, T) tiles of it.
    xp = jnp.pad(x0, ((0, 0), (0, 0), (pad, pad), (pad, pad)))
    patches = jnp.stack(
        [xp[:, :, dy:dy + H, dx:dx + W] for dy in range(ksize) for dx in range(ksize)],
        axis=2,
    ).reshape(N, C * KK, HW)                        # row = c*KK + dy*ksize + dx

    x0_flat = x0.reshape(N, C, HW)
    # (O, C, kh, kw) -> (O, C*KK); column = c*KK + dy*ksize + dx (matches im2col rows).
    w_mat = conv_w.reshape(group * KK, C * KK)

    T = _pick_tile(HW, tile_target)
    n_tiles = HW // T

    kernel = functools.partial(hpf_kernel, ksize=ksize, group=group)

    out_flat = pl.pallas_call(
        kernel,
        out_shape=jax.ShapeDtypeStruct((N, C, HW), x0.dtype),
        grid_spec=pltpu.PrefetchScalarGridSpec(
            num_scalar_prefetch=0,
            grid=(N, n_tiles),
            in_specs=[
                pl.BlockSpec((1, C, T), lambda n, t: (n, 0, t)),
                pl.BlockSpec((1, C * KK, T), lambda n, t: (n, 0, t)),
                pl.BlockSpec((group * KK, C * KK), lambda n, t: (0, 0)),
            ],
            out_specs=pl.BlockSpec((1, C, T), lambda n, t: (n, 0, t)),
        ),
        compiler_params=pltpu.CompilerParams(
            dimension_semantics=("parallel", "parallel")),
    )(x0_flat, patches, w_mat)

    return out_flat.reshape(N, C, H, W)


def hpf_reference(x0, conv_w, *, ksize=3, group=3):
    """Pure-JAX reference (the module always has group == C == 3)."""
    N, C, H, W = x0.shape
    logits = jax.lax.conv_general_dilated(
        x0, conv_w, window_strides=(1, 1), padding="SAME",
        dimension_numbers=("NCHW", "OIHW", "NCHW"),
    )
    sigma = jax.nn.softmax(logits, axis=1)                       # (N, group*KK, H, W)
    pad = ksize // 2
    xp = jnp.pad(x0, ((0, 0), (0, 0), (pad, pad), (pad, pad)))
    patches = jnp.stack(
        [xp[:, :, dy:dy + H, dx:dx + W] for dy in range(ksize) for dx in range(ksize)],
        axis=2,
    )                                                            # (N, C, KK, H, W)
    sig = sigma.reshape(N, C, ksize * ksize, H, W)               # group == C here
    s = jnp.sum(patches * sig, axis=2)
    return x0 - s


if __name__ == "__main__":
    key = jax.random.PRNGKey(0)
    k_x, k_w = jax.random.split(key)

    N, C, H, W = 2, 3, 16, 16            # in_channels=3 is fixed by the module
    ksize, group = 3, 3
    out_ch = group * ksize * ksize       # 27

    x0 = jax.random.normal(k_x, (N, C, H, W), dtype=jnp.float32)

    # Kaiming normal, mode='fan_out', nonlinearity='relu':
    # fan_out = out_ch * ksize * ksize, std = sqrt(2 / fan_out)
    fan_out = out_ch * ksize * ksize
    std = float(np.sqrt(2.0 / fan_out))
    conv_w = jax.random.normal(k_w, (out_ch, C, ksize, ksize), dtype=jnp.float32) * std

    ref = jax.block_until_ready(hpf_reference(x0, conv_w, ksize=ksize, group=group))

    # Default tiling (single 256-pixel tile at this size).
    out = jax.block_until_ready(hpf_forward(x0, conv_w, ksize=ksize, group=group))
    np.testing.assert_allclose(np.asarray(out), np.asarray(ref), rtol=1e-4, atol=1e-4)

    # Exercise the multi-tile spatial grid path (two 128-pixel tiles per image).
    out_tiled = jax.block_until_ready(
        hpf_forward(x0, conv_w, ksize=ksize, group=group, tile_target=128))
    np.testing.assert_allclose(np.asarray(out_tiled), np.asarray(ref), rtol=1e-4, atol=1e-4)

    print("KERNEL_OK")
</pallas_src>

<mosaic_0001>
module attributes {stable_mosaic.version = 11 : i64} {
  func.func @hpf_kernel(%arg0: i32, %arg1: i32, %arg2: memref<1x3x256xf32, #tpu.memory_space<vmem>>, %arg3: memref<1x27x256xf32, #tpu.memory_space<vmem>>, %arg4: memref<27x27xf32, #tpu.memory_space<vmem>>, %arg5: memref<1x3x256xf32, #tpu.memory_space<vmem>>) attributes {dimension_semantics = [#tpu.dimension_semantics<parallel>, #tpu.dimension_semantics<parallel>], iteration_bounds = array<i64: 2, 1>, scalar_prefetch = 0 : i64, scratch_operands = 0 : i64, tpu.core_type = #tpu.core_type<tc>, window_params = [{transform_indices = @transform_0, window_bounds = array<i64: 1, 3, 256>}, {transform_indices = @transform_1, window_bounds = array<i64: 1, 27, 256>}, {pipeline_mode = #tpu.pipeline_mode<synchronous>, transform_indices = @transform_2, window_bounds = array<i64: 27, 27>}, {transform_indices = @transform_3, window_bounds = array<i64: 1, 3, 256>}]} {
    %c0 = arith.constant 0 : index
    %c0_0 = arith.constant 0 : index
    %c0_1 = arith.constant 0 : index
    %0 = vector.load %arg3[%c0, %c0_0, %c0_1] : memref<1x27x256xf32, #tpu.memory_space<vmem>>, vector<1x27x256xf32>
    %1 = vector.shape_cast %0 : vector<1x27x256xf32> to vector<27x256xf32>
    %c0_2 = arith.constant 0 : index
    %c0_3 = arith.constant 0 : index
    %c0_4 = arith.constant 0 : index
    %2 = vector.load %arg2[%c0_2, %c0_3, %c0_4] : memref<1x3x256xf32, #tpu.memory_space<vmem>>, vector<1x3x256xf32>
    %3 = vector.shape_cast %2 : vector<1x3x256xf32> to vector<3x256xf32>
    %c0_5 = arith.constant 0 : index
    %c0_6 = arith.constant 0 : index
    %4 = vector.load %arg4[%c0_5, %c0_6] : memref<27x27xf32, #tpu.memory_space<vmem>>, vector<27x27xf32>
    %cst = arith.constant dense<0.000000e+00> : vector<27x256xf32>
    %5 = tpu.matmul %4, %1, %cst {dimension_numbers = #tpu.dot_dimension_numbers<[1], [0], [0], [1], [0, 0, 1, 1], [], []>} : vector<27x27xf32>, vector<27x256xf32>, vector<27x256xf32> -> vector<27x256xf32>
    %cst_7 = arith.constant dense<0xFF800000> : vector<256xf32>
    %6 = vector.multi_reduction <maximumf>, %5, %cst_7 [0] : vector<27x256xf32> to vector<256xf32>
    %7 = vector.shape_cast %6 : vector<256xf32> to vector<1x256xf32>
    %8 = vector.broadcast %7 : vector<1x256xf32> to vector<27x256xf32>
    %9 = arith.subf %5, %8 : vector<27x256xf32>
    %10 = math.exp %9 : vector<27x256xf32>
    %cst_8 = arith.constant dense<0.000000e+00> : vector<256xf32>
    %11 = vector.multi_reduction <add>, %10, %cst_8 [0] : vector<27x256xf32> to vector<256xf32>
    %12 = vector.shape_cast %11 : vector<256xf32> to vector<1x256xf32>
    %13 = vector.shape_cast %1 : vector<27x256xf32> to vector<3x1x9x256xf32>
    %14 = vector.shape_cast %10 : vector<27x256xf32> to vector<3x1x9x256xf32>
    %15 = arith.mulf %13, %14 : vector<3x1x9x256xf32>
    %cst_9 = arith.constant dense<0.000000e+00> : vector<3x1x256xf32>
    %16 = vector.multi_reduction <add>, %15, %cst_9 [2] : vector<3x1x9x256xf32> to vector<3x1x256xf32>
    %17 = vector.shape_cast %16 : vector<3x1x256xf32> to vector<3x256xf32>
    %18 = tpu.reciprocal %12 : vector<1x256xf32> -> vector<1x256xf32>
    %19 = vector.broadcast %18 : vector<1x256xf32> to vector<3x256xf32>
    %20 = arith.mulf %17, %19 : vector<3x256xf32>
    %21 = arith.subf %3, %20 : vector<3x256xf32>
    %c0_10 = arith.constant 0 : index
    %c0_11 = arith.constant 0 : index
    %c0_12 = arith.constant 0 : index
    %22 = vector.load %arg5[%c0_10, %c0_11, %c0_12] : memref<1x3x256xf32, #tpu.memory_space<vmem>>, vector<1x3x256xf32>
    %23 = vector.shape_cast %22 : vector<1x3x256xf32> to vector<3x256xf32>
    %24 = vector.shape_cast %21 : vector<3x256xf32> to vector<1x3x256xf32>
    tpu.vector_store %arg5[%c0_10, %c0_11, %c0_12], %24 {strides = array<i32>} : memref<1x3x256xf32, #tpu.memory_space<vmem>>, vector<1x3x256xf32>,
    return
  }
  func.func @transform_0(%arg0: i32, %arg1: i32) -> (i32, i32, i32) {
    %c0_i32 = arith.constant 0 : i32
    %c0_i32_0 = arith.constant 0 : i32
    return %arg0, %c0_i32, %arg1 : i32, i32, i32
  }
  func.func @transform_1(%arg0: i32, %arg1: i32) -> (i32, i32, i32) {
    %c0_i32 = arith.constant 0 : i32
    %c0_i32_0 = arith.constant 0 : i32
    return %arg0, %c0_i32, %arg1 : i32, i32, i32
  }
  func.func @transform_2(%arg0: i32, %arg1: i32) -> (i32, i32) {
    %c0_i32 = arith.constant 0 : i32
    %c0_i32_0 = arith.constant 0 : i32
    %c0_i32_1 = arith.constant 0 : i32
    return %c0_i32, %c0_i32_0 : i32, i32
  }
  func.func @transform_3(%arg0: i32, %arg1: i32) -> (i32, i32, i32) {
    %c0_i32 = arith.constant 0 : i32
    %c0_i32_0 = arith.constant 0 : i32
    return %arg0, %c0_i32, %arg1 : i32, i32, i32
  }
}

</mosaic_0001>

<llo_original>
// kernel: tpu_custom_call.1
$region0: #{tpu_custom_call.1}
  #allocation0 [shape = 'u32[]', space=smem, size = 0x4, offset = 0x4, fixed_abs, tag = 'smem constant byte address 0x4 - core index']
  #allocation1 [shape = 'u32[144,128]{1,0:T(1,128)}', space=vmem, size = 0x12000, scoped, tag = 'internal scratch']
  %s0 = inlined_call_operand.vmem [shape: f32[2,3,256], index: 0, kind: input, shape index: {}]
  %s1 = inlined_call_operand.vmem [shape: f32[2,27,256], index: 1, kind: input, shape index: {}]
  %s2 = inlined_call_operand.vmem [shape: f32[27,27], index: 2, kind: input, shape index: {}]
  %s3 = inlined_call_operand.vmem [shape: f32[2,3,256], index: 3, kind: output, shape index: {}]
  %s4 = sld [smem:[#allocation0]]
  $region45: #{tpu_custom_call.1} parent=0
    _
  %s6 = ssub.s32 1, %s4
  %s7 = scalar_select 0, %s6, %s4
  loop: start=0, step=1, limit=4
  $region2: #{tpu_custom_call.1} parent=0 // loop_pre_header
    _
  $region3: #{tpu_custom_call.1} parent=0 // loop_header
    %s9 = sphi 0, %s13
    %p10 = scmp.ge.s32.totalorder %s9, 4
    %s16 = sphi 0, %s28
    %s17 = sphi 0, %s24
    %s18 = sphi 0, %s16
    %s19 = sphi 0, %s17
    %s20 = sphi 0, %s18
    %s21 = sphi 0, %s19
    %s33 = sphi 0, %s35
    %s36 = sphi 0, %s33
    %s37 = sphi 0, %s36
    %s53 = sphi 0, %s37
    %s61 = sphi 0, %s63
    %s64 = sphi 0, %s61
    %s65 = sphi 0, %s64
    %s81 = sphi 0, %s65
    %s85 = sphi 0, %s85
    %s87 = sphi 0, %s85
    %s88 = sphi 0, %s87
    %s102 = sphi 0, %s88
    %s110 = sphi 0, %s112
    %s113 = sphi 0, %s110
    %s114 = sphi 0, %s113
    %s130 = sphi 0, %s114
  $region4: #{tpu_custom_call.1} parent=0 // loop_header_branch
    %12 = sbr.rel (%p10) target = $region8
  $region5: #{tpu_custom_call.1} parent=0 // loop_body
    %s14 = ssub.s32 %s9, 1
    %s15 = ssub.s32 %s9, 2
    %s22 = sadd.s32 1, %s17
    %p23 = scmp.ge.s32.totalorder %s22, 1
    %s24 = scalar_select %p23, 0, %s22
    %s25 = sadd.s32 1, %s16
    %s26 = scalar_select %p23, %s25, %s16
    %p27 = scmp.ge.s32.totalorder %s26, 2
    %s28 = scalar_select %p27, 0, %s26
    %s29 = ssub.s32 %s16, %s28
    %s30 = ssub.s32 %s17, %s24
    %s31 = sor.u32 %s29, %s30
    %p32 = scmp.eq.s32.totalorder %s31, 0
    %s34 = sadd.s32 %s33, 1
    %s35 = scalar_select %p32, %s33, %s34
    %p38 = pneg %p32
    %p39 = scmp.eq.s32.totalorder %s9, 1
    %p40 = por %p38, %p39
    %p41 = scmp.ne.s32.totalorder %s33, %s36
    %p42 = scmp.eq.s32.totalorder %s9, 0
    %p43 = por %p41, %p42
    %p44 = scmp.ne.s32.totalorder %s33, %s36
    %p45 = scmp.eq.s32.totalorder %s14, 1
    %p46 = por %p44, %p45
    %p47 = scmp.ne.s32.totalorder %s36, %s37
    %p48 = scmp.eq.s32.totalorder %s14, 0
    %p49 = por %p47, %p48
    %p50 = scmp.ne.s32.totalorder %s36, %s37
    %p51 = scmp.eq.s32.totalorder %s15, 1
    %p52 = por %p50, %p51
    %p54 = scmp.ne.s32.totalorder %s37, %s53
    %p55 = scmp.eq.s32.totalorder %s15, 0
    %p56 = por %p54, %p55
    %s57 = ssub.s32 %s16, %s28
    %s58 = ssub.s32 %s17, %s24
    %s59 = sor.u32 %s57, %s58
    %p60 = scmp.eq.s32.totalorder %s59, 0
    %s62 = sadd.s32 %s61, 1
    %s63 = scalar_select %p60, %s61, %s62
    %p66 = pneg %p60
    %p67 = scmp.eq.s32.totalorder %s9, 1
    %p68 = por %p66, %p67
    %p69 = scmp.ne.s32.totalorder %s61, %s64
    %p70 = scmp.eq.s32.totalorder %s9, 0
    %p71 = por %p69, %p70
    %p72 = scmp.ne.s32.totalorder %s61, %s64
    %p73 = scmp.eq.s32.totalorder %s14, 1
    %p74 = por %p72, %p73
    %p75 = scmp.ne.s32.totalorder %s64, %s65
    %p76 = scmp.eq.s32.totalorder %s14, 0
    %p77 = por %p75, %p76
    %p78 = scmp.ne.s32.totalorder %s64, %s65
    %p79 = scmp.eq.s32.totalorder %s15, 1
    %p80 = por %p78, %p79
    %p82 = scmp.ne.s32.totalorder %s65, %s81
    %p83 = scmp.eq.s32.totalorder %s15, 0
    %p84 = por %p82, %p83
    %s86 = sadd.s32 %s85, 1
    %p89 = scmp.eq.s32.totalorder %s9, 1
    %p90 = scmp.ne.s32.totalorder %s85, %s87
    %p91 = scmp.eq.s32.totalorder %s9, 0
    %p92 = por %p90, %p91
    %p93 = scmp.ne.s32.totalorder %s85, %s87
    %p94 = scmp.eq.s32.totalorder %s14, 1
    %p95 = por %p93, %p94
    %p96 = scmp.ne.s32.totalorder %s87, %s88
    %p97 = scmp.eq.s32.totalorder %s14, 0
    %p98 = por %p96, %p97
    %p99 = scmp.ne.s32.totalorder %s87, %s88
    %p100 = scmp.eq.s32.totalorder %s15, 1
    %p101 = por %p99, %p100
    %p103 = scmp.ne.s32.totalorder %s88, %s102
    %p104 = scmp.eq.s32.totalorder %s15, 0
    %p105 = por %p103, %p104
    %s106 = ssub.s32 %s16, %s28
    %s107 = ssub.s32 %s17, %s24
    %s108 = sor.u32 %s106, %s107
    %p109 = scmp.eq.s32.totalorder %s108, 0
    %s111 = sadd.s32 %s110, 1
    %s112 = scalar_select %p109, %s110, %s111
    %p115 = pneg %p109
    %p116 = scmp.eq.s32.totalorder %s9, 1
    %p117 = por %p115, %p116
    %p118 = scmp.ne.s32.totalorder %s110, %s113
    %p119 = scmp.eq.s32.totalorder %s9, 0
    %p120 = por %p118, %p119
    %p121 = scmp.ne.s32.totalorder %s110, %s113
    %p122 = scmp.eq.s32.totalorder %s14, 1
    %p123 = por %p121, %p122
    %p124 = scmp.ne.s32.totalorder %s113, %s114
    %p125 = scmp.eq.s32.totalorder %s14, 0
    %p126 = por %p124, %p125
    %p127 = scmp.ne.s32.totalorder %s113, %s114
    %p128 = scmp.eq.s32.totalorder %s15, 1
    %p129 = por %p127, %p128
    %p131 = scmp.ne.s32.totalorder %s114, %s130
    %p132 = scmp.eq.s32.totalorder %s15, 0
    %p133 = por %p131, %p132
    %p134 = scmp.le.s32.totalorder 1, %s9
    %p135 = scmp.lt.s32.totalorder %s9, 3
    %p136 = pnand %p134, %p135
    %p137 = pneg %p136
    // Predicated region
    $region9: #{tpu_custom_call.1} parent=5 // pred_check
      _
    $region10: #{tpu_custom_call.1} parent=5 // pred_check_branch
      %139 = sbr.rel (%p136) target = $region12
    $region11: #{tpu_custom_call.1} parent=5 // pred_region
      %s140 = ssub.s32 %s9, 1
      // Predicated region
      $region13: #{tpu_custom_call.1} parent=11 // pred_check
        %p141 = pneg %p98
      $region14: #{tpu_custom_call.1} parent=11 // pred_check_branch
        %143 = sbr.rel (%p141) target = $region16
      $region15: #{tpu_custom_call.1} parent=11 // pred_region
        _
      $region16: #{tpu_custom_call.1} parent=11 // pred_fallthru
        _
    $region12: #{tpu_custom_call.1} parent=5 // pred_fallthru
      _
    %p144 = scmp.lt.s32.totalorder %s9, 2
    // Predicated region
    $region17: #{tpu_custom_call.1} parent=5 // pred_check
      %p145 = pneg %p144
    $region18: #{tpu_custom_call.1} parent=5 // pred_check_branch
      %147 = sbr.rel (%p145) target = $region20
    $region19: #{tpu_custom_call.1} parent=5 // pred_region
      // Predicated region
      $region21: #{tpu_custom_call.1} parent=19 // pred_check
        %p148 = pneg %p43
      $region22: #{tpu_custom_call.1} parent=19 // pred_check_branch
        %150 = sbr.rel (%p148) target = $region24
      $region23: #{tpu_custom_call.1} parent=19 // pred_region
        %s151 = smul.u32 2, %s17
        %p152 = scmp.lt.s32.totalorder %s16, 1
        %s153 = scalar_select %p152, %s16, 1
        %p154 = scmp.lt.s32.totalorder %s151, 1
        %s155 = scalar_select %p154, %s151, 1
        %s156 = smul.addr %s153, 2
        %s157 = sadd.s32 %s155, %s156
        %s158 = smul.addr %s157, 4
        %s159 = scalar_lea.vmem %s0, %s158
        %s160 = smul.u32 2, %s17
      $region24: #{tpu_custom_call.1} parent=19 // pred_fallthru
        _
      // Predicated region
      $region25: #{tpu_custom_call.1} parent=19 // pred_check
        %p161 = pneg %p71
      $region26: #{tpu_custom_call.1} parent=19 // pred_check_branch
        %163 = sbr.rel (%p161) target = $region28
      $region27: #{tpu_custom_call.1} parent=19 // pred_region
        %s164 = smul.u32 2, %s17
        %p165 = scmp.lt.s32.totalorder %s16, 1
        %s166 = scalar_select %p165, %s16, 1
        %p167 = scmp.lt.s32.totalorder %s164, 1
        %s168 = scalar_select %p167, %s164, 1
        %s169 = smul.addr %s166, 8
        %s170 = sadd.s32 %s168, %s169
        %s171 = smul.addr %s170, 8
        %s172 = scalar_lea.vmem %s1, %s171
        %s173 = smul.u32 2, %s17
      $region28: #{tpu_custom_call.1} parent=19 // pred_fallthru
        _
    $region20: #{tpu_custom_call.1} parent=5 // pred_fallthru
      _
    %p174 = scmp.le.s32.totalorder 1, %s9
    %p175 = scmp.lt.s32.totalorder %s9, 3
    %p176 = pnand %p174, %p175
    %p177 = pneg %p176
    // Predicated region
    $region29: #{tpu_custom_call.1} parent=5 // pred_check
      _
    $region30: #{tpu_custom_call.1} parent=5 // pred_check_branch
      %179 = sbr.rel (%p176) target = $region32
    $region31: #{tpu_custom_call.1} parent=5 // pred_region
      %s180 = ssub.s32 %s9, 1
      %s181 = smul.u32 2, %s19
      %p182 = scmp.lt.s32.totalorder %s18, 1
      %s183 = scalar_select %p182, %s18, 1
      %p184 = scmp.lt.s32.totalorder %s181, 1
      %s185 = scalar_select %p184, %s181, 1
      %s186 = smul.addr %s183, 2
      %s187 = sadd.s32 %s185, %s186
      %s188 = smul.addr %s187, 4
      %s189 = scalar_lea.vmem %s0, %s188
      %p190 = pneg %p49
      %p191 = pneg %p46
      %s192 = smul.u32 2, %s19
      %p193 = scmp.lt.s32.totalorder %s18, 1
      %s194 = scalar_select %p193, %s18, 1
      %p195 = scmp.lt.s32.totalorder %s192, 1
      %s196 = scalar_select %p195, %s192, 1
      %s197 = smul.addr %s194, 8
      %s198 = sadd.s32 %s196, %s197
      %s199 = smul.addr %s198, 8
      %s200 = scalar_lea.vmem %s1, %s199
      %p201 = pneg %p77
      %p202 = pneg %p74
      %p203 = pneg %p98
      %p204 = pneg %p95
      %p205 = pneg %p126
      %p206 = pneg %p123
      %s207 = smul.u32 2, %s19
      %p208 = scmp.lt.s32.totalorder %s18, 1
      %s209 = scalar_select %p208, %s18, 1
      %p210 = scmp.lt.s32.totalorder %s207, 1
      %s211 = scalar_select %p210, %s207, 1
      %s212 = smul.addr %s209, 2
      %s213 = sadd.s32 %s211, %s212
      %s214 = smul.addr %s213, 4
      %s215 = scalar_lea.vmem %s3, %s214
      %s216 = smul.u32 2, %s19
      %p217 = scmp.lt.s32.totalorder %s18, 1
      %s218 = scalar_select %p217, %s18, 1
      %p219 = scmp.lt.s32.totalorder %s216, 1
      %s220 = scalar_select %p219, %s216, 1
      %s221 = smul.addr %s218, 2
      %s222 = sadd.s32 %s220, %s221
      %s223 = smul.addr %s222, 4
      %s224 = scalar_lea.vmem %s0, %s223
      %s225 = smul.u32 2, %s19
      %s226 = smul.u32 2, %s19
      %p227 = scmp.lt.s32.totalorder %s18, 1
      %s228 = scalar_select %p227, %s18, 1
      %p229 = scmp.lt.s32.totalorder %s226, 1
      %s230 = scalar_select %p229, %s226, 1
      %s231 = smul.addr %s228, 8
      %s232 = sadd.s32 %s230, %s231
      %s233 = smul.addr %s232, 8
      %s234 = scalar_lea.vmem %s1, %s233
      %s235 = smul.u32 2, %s19
      %s236 = smul.u32 2, %s19
      %p237 = scmp.lt.s32.totalorder %s18, 1
      %s238 = scalar_select %p237, %s18, 1
      %p239 = scmp.lt.s32.totalorder %s236, 1
      %s240 = scalar_select %p239, %s236, 1
      %s241 = smul.addr %s238, 2
      %s242 = sadd.s32 %s240, %s241
      %s243 = smul.addr %s242, 4
      %s244 = scalar_lea.vmem %s3, %s243
      %s245 = smul.u32 2, %s19
      %v246 = vld [vmem:[%s234] sm:$0xff]
      %v247 = vld [vmem:[%s234 + $0x8] sm:$0xff]
      %v248 = vld [vmem:[%s234 + $0x10] sm:$0xff]
      %v249 = vld [vmem:[%s234 + $0x18] sm:$0xff]
      %v250 = vld [vmem:[%s234 + $0x20] sm:$0xff]
      %v251 = vld [vmem:[%s234 + $0x28] sm:$0xff]
      %v252 = vld [vmem:[%s234 + $0x30] sm:$0x7]
      %v253 = vld [vmem:[%s234 + $0x38] sm:$0x7]
      %v254 = vld [vmem:[%s224] sm:$0x77]
      %v255 = vld [vmem:[%s2] sm:$0xff]
      %v256 = vld [vmem:[%s2 + $0x8] sm:$0xff]
      %v257 = vld [vmem:[%s2 + $0x10] sm:$0xff]
      %v258 = vld [vmem:[%s2 + $0x18] sm:$0x7]
      %vm259 = vcmask 220160
      %v261 = vsel %vm259, %v255, 0
      %v264 = vsel %vm259, %v256, 0
      %v267 = vsel %vm259, %v257, 0
      %v270 = vsel %vm259, %v258, 0
      %vm272 = vcmask 1042432
      %v274 = vsel %vm272, %v252, 0
      %v277 = vsel %vm272, %v253, 0
      %279 = vmatprep.subr.mxu0 0.0
      %280 = vmatpush1.msra.mxu0 0.0
      %281 = vmatprep.subr.mxu0 0.0
      %282 = vmatpush1.msra.mxu0 0.0
      %283 = vmatprep.subr.mxu0 0.0
      %284 = vmatpush1.msra.mxu0 0.0
      %285 = vmatprep.subr.mxu0 0.0
      %286 = vmatpush1.msra.mxu0 0.0
      %287 = vmatprep.subr.mxu0 0.0
      %288 = vmatpush1.msra.mxu0 0.0
      %289 = vmatprep.subr.mxu0 0.0
      %290 = vmatpush1.msra.mxu0 0.0
      %291 = vmatprep.subr.mxu0 0.0
      %292 = vmatpush1.msra.mxu0 0.0
      %293 = vmatprep.subr.mxu0 0.0
      %294 = vmatpush1.msra.mxu0 0.0
      %295 = vmatprep.subr.mxu0 0.0
      %296 = vmatpush1.msra.mxu0 0.0
      %297 = vmatprep.subr.mxu0 0.0
      %298 = vmatpush1.msra.mxu0 0.0
      %299 = vmatprep.subr.mxu0 0.0
      %300 = vmatpush1.msra.mxu0 0.0
      %301 = vmatprep.subr.mxu0 0.0
      %302 = vmatpush1.msra.mxu0 0.0
      %303 = vmatprep.subr.mxu0 %v277
      %304 = vmatpush1.msra.mxu0 %v274
      %305 = vmatprep.subr.mxu0 %v251
      %306 = vmatpush1.msra.mxu0 %v250
      %307 = vmatprep.subr.mxu0 %v249
      %308 = vmatpush1.msra.mxu0 %v248
      %309 = vmatprep.subr.mxu0 %v247
      %310 = vmatpush1.msra.mxu0 %v246
      %311 = vmatprep.subr.mxu0 0.0
      %312 = vmatpush2.msra.mxu0 0.0
      %313 = vmatprep.subr.mxu0 0.0
      %314 = vmatpush2.msra.mxu0 0.0
      %315 = vmatprep.subr.mxu0 0.0
      %316 = vmatpush2.msra.mxu0 0.0
      %317 = vmatprep.subr.mxu0 0.0
      %318 = vmatpush2.msra.mxu0 0.0
      %319 = vmatprep.subr.mxu0 0.0
      %320 = vmatpush2.msra.mxu0 0.0
      %321 = vmatprep.subr.mxu0 0.0
      %322 = vmatpush2.msra.mxu0 0.0
      %323 = vmatprep.subr.mxu0 0.0
      %324 = vmatpush2.msra.mxu0 0.0
      %325 = vmatprep.subr.mxu0 0.0
      %326 = vmatpush2.msra.mxu0 0.0
      %327 = vmatprep.subr.mxu0 0.0
      %328 = vmatpush2.msra.mxu0 0.0
      %329 = vmatprep.subr.mxu0 0.0
      %330 = vmatpush2.msra.mxu0 0.0
      %331 = vmatprep.subr.mxu0 0.0
      %332 = vmatpush2.msra.mxu0 0.0
      %333 = vmatprep.subr.mxu0 0.0
      %334 = vmatpush2.msra.mxu0 0.0
      %335 = vmatprep.subr.mxu0 0.0
      %336 = vmatpush2.msra.mxu0 0.0
      %337 = vmatprep.subr.mxu0 0.0
      %338 = vmatpush2.msra.mxu0 0.0
      %339 = vmatprep.subr.mxu0 0.0
      %340 = vmatpush2.msra.mxu0 0.0
      %341 = vmatprep.subr.mxu0 0.0
      %342 = vmatpush2.msra.mxu0 0.0
      %343 = vmatprep.mubr.f32.mxu0 0.0
      %344 = vmatmul.mubr.f32.gmra.mxu0 %v261
      %v345 = vpop.f32.mrf.mxu0
      %v346 = vadd.f32 0.0, %v345
      %v347 = vpop.f32.mrf.mxu0
      %v348 = vadd.f32 0.0, %v347
      %349 = vmatprep.mubr.f32.mxu0 0.0
      %350 = vmatmul.mubr.f32.gmra.mxu0 %v264
      %v351 = vpop.f32.mrf.mxu0
      %v352 = vadd.f32 0.0, %v351
      %v353 = vpop.f32.mrf.mxu0
      %v354 = vadd.f32 0.0, %v353
      %355 = vmatprep.mubr.f32.mxu0 0.0
      %356 = vmatmul.mubr.f32.gmra.mxu0 %v267
      %v357 = vpop.f32.mrf.mxu0
      %v358 = vadd.f32 0.0, %v357
      %v359 = vpop.f32.mrf.mxu0
      %v360 = vadd.f32 0.0, %v359
      %361 = vmatprep.mubr.f32.mxu0 0.0
      %362 = vmatmul.mubr.f32.gmra.mxu0 %v270
      %v363 = vpop.f32.mrf.mxu0
      %v364 = vadd.f32 0.0, %v363
      %v365 = vpop.f32.mrf.mxu0
      %v366 = vadd.f32 0.0, %v365
      %367 = vdwg.mxu0
      %v368 = vmax.f32 %v346, %v358
      %v369 = vsel %vm272, %v364, -inf
      %v370 = vmax.f32 %v352, %v369
      %v371 = vmax.f32 %v368, %v370
      %v372 = vrot.slane %v371, 4
      %v373 = vmax.f32 %v371, %v372
      %v374 = vrot.slane %v373, 2
      %v375 = vmax.f32 %v373, %v374
      %v376 = vrot.slane %v375, 1
      %v377 = vmax.f32 %v375, %v376
      %v378 = vmax.f32 %v348, %v360
      %v379 = vsel %vm272, %v366, -inf
      %v380 = vmax.f32 %v354, %v379
      %v381 = vmax.f32 %v378, %v380
      %v382 = vrot.slane %v381, 4
      %v383 = vmax.f32 %v381, %v382
      %v384 = vrot.slane %v383, 2
      %v385 = vmax.f32 %v383, %v384
      %v386 = vrot.slane %v385, 1
      %v387 = vmax.f32 %v385, %v386
      %v388 = vsub.f32 %v346, %v377
      %v389 = vsub.f32 %v348, %v387
      %v390 = vsub.f32 %v352, %v377
      %v391 = vsub.f32 %v354, %v387
      %v392 = vsub.f32 %v358, %v377
      %v393 = vsub.f32 %v360, %v387
      %v394 = vsub.f32 %v364, %v377
      %v395 = vsub.f32 %v366, %v387
      %v396 = vmul.f32 %v388, 1.442695
      %v397 = vpow.pop %v396
      %v398 = vmul.f32 %v389, 1.442695
      %v399 = vpow.pop %v398
      %v400 = vmul.f32 %v390, 1.442695
      %v401 = vpow.pop %v400
      %v402 = vmul.f32 %v391, 1.442695
      %v403 = vpow.pop %v402
      %v404 = vmul.f32 %v392, 1.442695
      %v405 = vpow.pop %v404
      %v406 = vmul.f32 %v393, 1.442695
      %v407 = vpow.pop %v406
      %v408 = vmul.f32 %v394, 1.442695
      %v409 = vpow.pop %v408
      %v410 = vmul.f32 %v395, 1.442695
      %v411 = vpow.pop %v410
      %v412 = vadd.f32 %v397, %v401
      %v413 = vadd.f32 %v412, %v405
      %v414 = vsel %vm272, %v409, 0.0
      %v415 = vadd.f32 %v413, %v414
      %v416 = vrot.slane %v415, 4
      %v417 = vadd.f32 %v415, %v416
      %v418 = vrot.slane %v417, 2
      %v419 = vadd.f32 %v417, %v418
      %v420 = vrot.slane %v419, 1
      %v421 = vadd.f32 %v419, %v420
      %v422 = vadd.f32 %v399, %v403
      %v423 = vadd.f32 %v422, %v407
      %v424 = vsel %vm272, %v411, 0.0
      %v425 = vadd.f32 %v423, %v424
      %v426 = vrot.slane %v425, 4
      %v427 = vadd.f32 %v425, %v426
      %v428 = vrot.slane %v427, 2
      %v429 = vadd.f32 %v427, %v428
      %v430 = vrot.slane %v429, 1
      %v431 = vadd.f32 %v429, %v430
      %v438 = vcombine.low %v246, %v247
      %v439 = vcombine.high %v246, %v247
      %v441 = vunpack.c.l.s4 1966171168
      %v442 = vunpack.c.0.s8 %v441
      %v443 = vlaneseq
      %v444 = vshrl.u32 %v443, 7
      %v445 = vsub.s32 %v442, %v444
      %v446 = vrot.slane %v438, %v445
      %v448 = vunpack.c.l.s4 1966171168
      %v449 = vunpack.c.0.s8 %v448
      %v450 = vlaneseq
      %v451 = vshrl.u32 %v450, 7
      %v452 = vsub.s32 %v449, %v451
      %v453 = vrot.slane %v439, %v452
      %v454 = vcombine.high %v446, %v446
      %v455 = vcombine.high %v453, %v453
      %v457 = vunpack.c.l.s4 1966171168
      %v458 = vunpack.c.0.s8 %v457
      %v459 = vlaneseq
      %v460 = vshrl.u32 %v459, 7
      %v461 = vsub.s32 %v458, %v460
      %v462 = vrot.slane %v446, %v461
      %v464 = vunpack.c.l.s4 1966171168
      %v465 = vunpack.c.0.s8 %v464
      %v466 = vlaneseq
      %v467 = vshrl.u32 %v466, 7
      %v468 = vsub.s32 %v465, %v467
      %v469 = vrot.slane %v453, %v468
      %v471 = vunpack.c.l.s4 1966171168
      %v472 = vunpack.c.0.s8 %v471
      %v473 = vlaneseq
      %v474 = vshrl.u32 %v473, 7
      %v475 = vsub.s32 %v472, %v474
      %v476 = vrot.slane %v454, %v475
      %v478 = vunpack.c.l.s4 1966171168
      %v479 = vunpack.c.0.s8 %v478
      %v480 = vlaneseq
      %v481 = vshrl.u32 %v480, 7
      %v482 = vsub.s32 %v479, %v481
      %v483 = vrot.slane %v455, %v482
      %v484 = vcombine.high %v462, %v462
      %v485 = vcombine.high %v469, %v469
      %v486 = vcombine.high %v476, %v476
      %v487 = vcombine.high %v483, %v483
      %v488 = vcombine.low %v248, %v249
      %v489 = vcombine.high %v248, %v249
      %v491 = vunpack.c.l.s4 1966171168
      %v492 = vunpack.c.0.s8 %v491
      %v493 = vlaneseq
      %v494 = vshrl.u32 %v493, 7
      %v495 = vsub.s32 %v492, %v494
      %v496 = vrot.slane %v488, %v495
      %v498 = vunpack.c.l.s4 1966171168
      %v499 = vunpack.c.0.s8 %v498
      %v500 = vlaneseq
      %v501 = vshrl.u32 %v500, 7
      %v502 = vsub.s32 %v499, %v501
      %v503 = vrot.slane %v489, %v502
      %v504 = vcombine.high %v496, %v496
      %v505 = vcombine.high %v503, %v503
      %v507 = vunpack.c.l.s4 1966171168
      %v508 = vunpack.c.0.s8 %v507
      %v509 = vlaneseq
      %v510 = vshrl.u32 %v509, 7
      %v511 = vsub.s32 %v508, %v510
      %v512 = vrot.slane %v496, %v511
      %v514 = vunpack.c.l.s4 1966171168
      %v515 = vunpack.c.0.s8 %v514
      %v516 = vlaneseq
      %v517 = vshrl.u32 %v516, 7
      %v518 = vsub.s32 %v515, %v517
      %v519 = vrot.slane %v503, %v518
      %v521 = vunpack.c.l.s4 1966171168
      %v522 = vunpack.c.0.s8 %v521
      %v523 = vlaneseq
      %v524 = vshrl.u32 %v523, 7
      %v525 = vsub.s32 %v522, %v524
      %v526 = vrot.slane %v504, %v525
      %v528 = vunpack.c.l.s4 1966171168
      %v529 = vunpack.c.0.s8 %v528
      %v530 = vlaneseq
      %v531 = vshrl.u32 %v530, 7
      %v532 = vsub.s32 %v529, %v531
      %v533 = vrot.slane %v505, %v532
      %v534 = vcombine.high %v512, %v512
      %v535 = vcombine.high %v519, %v519
      %v536 = vcombine.high %v526, %v526
      %v537 = vcombine.high %v533, %v533
      %v538 = vcombine.low %v250, %v251
      %v539 = vcombine.high %v250, %v251
      %v541 = vunpack.c.l.s4 1966171168
      %v542 = vunpack.c.0.s8 %v541
      %v543 = vlaneseq
      %v544 = vshrl.u32 %v543, 7
      %v545 = vsub.s32 %v542, %v544
      %v546 = vrot.slane %v538, %v545
      %v548 = vunpack.c.l.s4 1966171168
      %v549 = vunpack.c.0.s8 %v548
      %v550 = vlaneseq
      %v551 = vshrl.u32 %v550, 7
      %v552 = vsub.s32 %v549, %v551
      %v553 = vrot.slane %v539, %v552
      %v554 = vcombine.high %v546, %v546
      %v555 = vcombine.high %v553, %v553
      %v557 = vunpack.c.l.s4 1966171168
      %v558 = vunpack.c.0.s8 %v557
      %v559 = vlaneseq
      %v560 = vshrl.u32 %v559, 7
      %v561 = vsub.s32 %v558, %v560
      %v562 = vrot.slane %v546, %v561
      %v564 = vunpack.c.l.s4 1966171168
      %v565 = vunpack.c.0.s8 %v564
      %v566 = vlaneseq
      %v567 = vshrl.u32 %v566, 7
      %v568 = vsub.s32 %v565, %v567
      %v569 = vrot.slane %v553, %v568
      %v571 = vunpack.c.l.s4 1966171168
      %v572 = vunpack.c.0.s8 %v571
      %v573 = vlaneseq
      %v574 = vshrl.u32 %v573, 7
      %v575 = vsub.s32 %v572, %v574
      %v576 = vrot.slane %v554, %v575
      %v578 = vunpack.c.l.s4 1966171168
      %v579 = vunpack.c.0.s8 %v578
      %v580 = vlaneseq
      %v581 = vshrl.u32 %v580, 7
      %v582 = vsub.s32 %v579, %v581
      %v583 = vrot.slane %v555, %v582
      %v584 = vcombine.high %v562, %v562
      %v585 = vcombine.high %v569, %v569
      %v586 = vcombine.high %v576, %v576
      %v587 = vcombine.high %v583, %v583
      %v588 = vcombine.low %v252, %v253
      %v590 = vunpack.c.l.s4 1966171168
      %v591 = vunpack.c.0.s8 %v590
      %v592 = vlaneseq
      %v593 = vshrl.u32 %v592, 7
      %v594 = vsub.s32 %v591, %v593
      %v595 = vrot.slane %v588, %v594
      %v596 = vcombine.high %v595, %v595
      %v598 = vunpack.c.l.s4 1966171168
      %v599 = vunpack.c.0.s8 %v598
      %v600 = vlaneseq
      %v601 = vshrl.u32 %v600, 7
      %v602 = vsub.s32 %v599, %v601
      %v603 = vrot.slane %v595, %v602
      %v605 = vunpack.c.l.s4 1966171168
      %v606 = vunpack.c.0.s8 %v605
      %v607 = vlaneseq
      %v608 = vshrl.u32 %v607, 7
      %v609 = vsub.s32 %v606, %v608
      %v610 = vrot.slane %v596, %v609
      %v611 = vcombine.high %v603, %v603
      %v647 = vcombine.low %v397, %v399
      %v648 = vcombine.high %v397, %v399
      %v650 = vunpack.c.l.s4 1966171168
      %v651 = vunpack.c.0.s8 %v650
      %v652 = vlaneseq
      %v653 = vshrl.u32 %v652, 7
      %v654 = vsub.s32 %v651, %v653
      %v655 = vrot.slane %v647, %v654
      %v657 = vunpack.c.l.s4 1966171168
      %v658 = vunpack.c.0.s8 %v657
      %v659 = vlaneseq
      %v660 = vshrl.u32 %v659, 7
      %v661 = vsub.s32 %v658, %v660
      %v662 = vrot.slane %v648, %v661
      %v663 = vcombine.high %v655, %v655
      %v664 = vcombine.high %v662, %v662
      %v666 = vunpack.c.l.s4 1966171168
      %v667 = vunpack.c.0.s8 %v666
      %v668 = vlaneseq
      %v669 = vshrl.u32 %v668, 7
      %v670 = vsub.s32 %v667, %v669
      %v671 = vrot.slane %v655, %v670
      %v673 = vunpack.c.l.s4 1966171168
      %v674 = vunpack.c.0.s8 %v673
      %v675 = vlaneseq
      %v676 = vshrl.u32 %v675, 7
      %v677 = vsub.s32 %v674, %v676
      %v678 = vrot.slane %v662, %v677
      %v680 = vunpack.c.l.s4 1966171168
      %v681 = vunpack.c.0.s8 %v680
      %v682 = vlaneseq
      %v683 = vshrl.u32 %v682, 7
      %v684 = vsub.s32 %v681, %v683
      %v685 = vrot.slane %v663, %v684
      %v687 = vunpack.c.l.s4 1966171168
      %v688 = vunpack.c.0.s8 %v687
      %v689 = vlaneseq
      %v690 = vshrl.u32 %v689, 7
      %v691 = vsub.s32 %v688, %v690
      %v692 = vrot.slane %v664, %v691
      %v693 = vcombine.high %v671, %v671
      %v694 = vcombine.high %v678, %v678
      %v695 = vcombine.high %v685, %v685
      %v696 = vcombine.high %v692, %v692
      %v697 = vcombine.low %v401, %v403
      %v698 = vcombine.high %v401, %v403
      %v700 = vunpack.c.l.s4 1966171168
      %v701 = vunpack.c.0.s8 %v700
      %v702 = vlaneseq
      %v703 = vshrl.u32 %v702, 7
      %v704 = vsub.s32 %v701, %v703
      %v705 = vrot.slane %v697, %v704
      %v707 = vunpack.c.l.s4 1966171168
      %v708 = vunpack.c.0.s8 %v707
      %v709 = vlaneseq
      %v710 = vshrl.u32 %v709, 7
      %v711 = vsub.s32 %v708, %v710
      %v712 = vrot.slane %v698, %v711
      %v713 = vcombine.high %v705, %v705
      %v714 = vcombine.high %v712, %v712
      %v716 = vunpack.c.l.s4 1966171168
      %v717 = vunpack.c.0.s8 %v716
      %v718 = vlaneseq
      %v719 = vshrl.u32 %v718, 7
      %v720 = vsub.s32 %v717, %v719
      %v721 = vrot.slane %v705, %v720
      %v723 = vunpack.c.l.s4 1966171168
      %v724 = vunpack.c.0.s8 %v723
      %v725 = vlaneseq
      %v726 = vshrl.u32 %v725, 7
      %v727 = vsub.s32 %v724, %v726
      %v728 = vrot.slane %v712, %v727
      %v730 = vunpack.c.l.s4 1966171168
      %v731 = vunpack.c.0.s8 %v730
      %v732 = vlaneseq
      %v733 = vshrl.u32 %v732, 7
      %v734 = vsub.s32 %v731, %v733
      %v735 = vrot.slane %v713, %v734
      %v737 = vunpack.c.l.s4 1966171168
      %v738 = vunpack.c.0.s8 %v737
      %v739 = vlaneseq
      %v740 = vshrl.u32 %v739, 7
      %v741 = vsub.s32 %v738, %v740
      %v742 = vrot.slane %v714, %v741
      %v743 = vcombine.high %v721, %v721
      %v744 = vcombine.high %v728, %v728
      %v745 = vcombine.high %v735, %v735
      %v746 = vcombine.high %v742, %v742
      %v747 = vcombine.low %v405, %v407
      %v748 = vcombine.high %v405, %v407
      %v750 = vunpack.c.l.s4 1966171168
      %v751 = vunpack.c.0.s8 %v750
      %v752 = vlaneseq
      %v753 = vshrl.u32 %v752, 7
      %v754 = vsub.s32 %v751, %v753
      %v755 = vrot.slane %v747, %v754
      %v757 = vunpack.c.l.s4 1966171168
      %v758 = vunpack.c.0.s8 %v757
      %v759 = vlaneseq
      %v760 = vshrl.u32 %v759, 7
      %v761 = vsub.s32 %v758, %v760
      %v762 = vrot.slane %v748, %v761
      %v763 = vcombine.high %v755, %v755
      %v764 = vcombine.high %v762, %v762
      %v766 = vunpack.c.l.s4 1966171168
      %v767 = vunpack.c.0.s8 %v766
      %v768 = vlaneseq
      %v769 = vshrl.u32 %v768, 7
      %v770 = vsub.s32 %v767, %v769
      %v771 = vrot.slane %v755, %v770
      %v773 = vunpack.c.l.s4 1966171168
      %v774 = vunpack.c.0.s8 %v773
      %v775 = vlaneseq
      %v776 = vshrl.u32 %v775, 7
      %v777 = vsub.s32 %v774, %v776
      %v778 = vrot.slane %v762, %v777
      %v780 = vunpack.c.l.s4 1966171168
      %v781 = vunpack.c.0.s8 %v780
      %v782 = vlaneseq
      %v783 = vshrl.u32 %v782, 7
      %v784 = vsub.s32 %v781, %v783
      %v785 = vrot.slane %v763, %v784
      %v787 = vunpack.c.l.s4 1966171168
      %v788 = vunpack.c.0.s8 %v787
      %v789 = vlaneseq
      %v790 = vshrl.u32 %v789, 7
      %v791 = vsub.s32 %v788, %v790
      %v792 = vrot.slane %v764, %v791
      %v793 = vcombine.high %v771, %v771
      %v794 = vcombine.high %v778, %v778
      %v795 = vcombine.high %v785, %v785
      %v796 = vcombine.high %v792, %v792
      %v797 = vcombine.low %v409, %v411
      %v799 = vunpack.c.l.s4 1966171168
      %v800 = vunpack.c.0.s8 %v799
      %v801 = vlaneseq
      %v802 = vshrl.u32 %v801, 7
      %v803 = vsub.s32 %v800, %v802
      %v804 = vrot.slane %v797, %v803
      %v805 = vcombine.high %v804, %v804
      %v807 = vunpack.c.l.s4 1966171168
      %v808 = vunpack.c.0.s8 %v807
      %v809 = vlaneseq
      %v810 = vshrl.u32 %v809, 7
      %v811 = vsub.s32 %v808, %v810
      %v812 = vrot.slane %v804, %v811
      %v814 = vunpack.c.l.s4 1966171168
      %v815 = vunpack.c.0.s8 %v814
      %v816 = vlaneseq
      %v817 = vshrl.u32 %v816, 7
      %v818 = vsub.s32 %v815, %v817
      %v819 = vrot.slane %v805, %v818
      %v820 = vcombine.high %v812, %v812
      %v848 = vmul.f32 %v462, %v671
      %v849 = vmul.f32 %v476, %v685
      %v850 = vmul.f32 %v484, %v693
      %v851 = vmul.f32 %v486, %v695
      %v852 = vmul.f32 %v469, %v678
      %v853 = vmul.f32 %v483, %v692
      %v854 = vmul.f32 %v485, %v694
      %v855 = vmul.f32 %v487, %v696
      %v856 = vmul.f32 %v512, %v721
      %v857 = vmul.f32 %v526, %v735
      %v858 = vmul.f32 %v534, %v743
      %v859 = vmul.f32 %v536, %v745
      %v860 = vmul.f32 %v519, %v728
      %v861 = vmul.f32 %v533, %v742
      %v862 = vmul.f32 %v535, %v744
      %v863 = vmul.f32 %v537, %v746
      %v864 = vmul.f32 %v562, %v771
      %v865 = vmul.f32 %v576, %v785
      %v866 = vmul.f32 %v584, %v793
      %v867 = vmul.f32 %v586, %v795
      %v868 = vmul.f32 %v569, %v778
      %v869 = vmul.f32 %v583, %v792
      %v870 = vmul.f32 %v585, %v794
      %v871 = vmul.f32 %v587, %v796
      %v872 = vmul.f32 %v603, %v812
      %v873 = vmul.f32 %v610, %v819
      %v874 = vmul.f32 %v611, %v820
      %v902 = vcombine.low %v848, %v849
      %v903 = vcombine.low %v850, %v851
      %v904 = vcombine.low %v852, %v853
      %v905 = vcombine.low %v854, %v855
      %v907 = vunpack.c.l.s4 1966171168
      %v908 = vunpack.c.0.s8 %v907
      %v909 = vlaneseq
      %v910 = vshrl.u32 %v909, 7
      %v911 = vsub.s32 %v908, %v910
      %v912 = vrot.slane %v902, %v911
      %v914 = vunpack.c.l.s4 1966171168
      %v915 = vunpack.c.0.s8 %v914
      %v916 = vlaneseq
      %v917 = vshrl.u32 %v916, 7
      %v918 = vsub.s32 %v915, %v917
      %v919 = vrot.slane %v903, %v918
      %v921 = vunpack.c.l.s4 1966171168
      %v922 = vunpack.c.0.s8 %v921
      %v923 = vlaneseq
      %v924 = vshrl.u32 %v923, 7
      %v925 = vsub.s32 %v922, %v924
      %v926 = vrot.slane %v904, %v925
      %v928 = vunpack.c.l.s4 1966171168
      %v929 = vunpack.c.0.s8 %v928
      %v930 = vlaneseq
      %v931 = vshrl.u32 %v930, 7
      %v932 = vsub.s32 %v929, %v931
      %v933 = vrot.slane %v905, %v932
      %v934 = vcombine.low %v912, %v919
      %v935 = vcombine.high %v912, %v919
      %v936 = vcombine.low %v926, %v933
      %v937 = vcombine.high %v926, %v933
      %v939 = vunpack.c.l.s4 1966171168
      %v940 = vunpack.c.0.s8 %v939
      %v941 = vlaneseq
      %v942 = vshrl.u32 %v941, 7
      %v943 = vsub.s32 %v940, %v942
      %v944 = vrot.slane %v934, %v943
      %v946 = vunpack.c.l.s4 1966171168
      %v947 = vunpack.c.0.s8 %v946
      %v948 = vlaneseq
      %v949 = vshrl.u32 %v948, 7
      %v950 = vsub.s32 %v947, %v949
      %v951 = vrot.slane %v935, %v950
      %v953 = vunpack.c.l.s4 1966171168
      %v954 = vunpack.c.0.s8 %v953
      %v955 = vlaneseq
      %v956 = vshrl.u32 %v955, 7
      %v957 = vsub.s32 %v954, %v956
      %v958 = vrot.slane %v936, %v957
      %v960 = vunpack.c.l.s4 1966171168
      %v961 = vunpack.c.0.s8 %v960
      %v962 = vlaneseq
      %v963 = vshrl.u32 %v962, 7
      %v964 = vsub.s32 %v961, %v963
      %v965 = vrot.slane %v937, %v964
      %v966 = vcombine.low %v944, %v958
      %v967 = vcombine.low %v951, %v965
      %v969 = vunpack.c.l.s4 1966171168
      %v970 = vunpack.c.0.s8 %v969
      %v971 = vlaneseq
      %v972 = vshrl.u32 %v971, 7
      %v973 = vsub.s32 %v970, %v972
      %v974 = vrot.slane %v856, %v973
      %v975 = vcombine.high %v974, %v974
      %v977 = vunpack.c.l.s4 1966171168
      %v978 = vunpack.c.0.s8 %v977
      %v979 = vlaneseq
      %v980 = vshrl.u32 %v979, 7
      %v981 = vsub.s32 %v978, %v980
      %v982 = vrot.slane %v974, %v981
      %v984 = vunpack.c.l.s4 1966171168
      %v985 = vunpack.c.0.s8 %v984
      %v986 = vlaneseq
      %v987 = vshrl.u32 %v986, 7
      %v988 = vsub.s32 %v985, %v987
      %v989 = vrot.slane %v975, %v988
      %v990 = vcombine.low %v857, %v858
      %v991 = vcombine.low %v859, %v860
      %v992 = vcombine.low %v861, %v862
      %v993 = vcombine.low %v863, %v864
      %v995 = vunpack.c.l.s4 1966171168
      %v996 = vunpack.c.0.s8 %v995
      %v997 = vlaneseq
      %v998 = vshrl.u32 %v997, 7
      %v999 = vsub.s32 %v996, %v998
      %v1000 = vrot.slane %v990, %v999
      %v1002 = vunpack.c.l.s4 1966171168
      %v1003 = vunpack.c.0.s8 %v1002
      %v1004 = vlaneseq
      %v1005 = vshrl.u32 %v1004, 7
      %v1006 = vsub.s32 %v1003, %v1005
      %v1007 = vrot.slane %v991, %v1006
      %v1009 = vunpack.c.l.s4 1966171168
      %v1010 = vunpack.c.0.s8 %v1009
      %v1011 = vlaneseq
      %v1012 = vshrl.u32 %v1011, 7
      %v1013 = vsub.s32 %v1010, %v1012
      %v1014 = vrot.slane %v992, %v1013
      %v1016 = vunpack.c.l.s4 1966171168
      %v1017 = vunpack.c.0.s8 %v1016
      %v1018 = vlaneseq
      %v1019 = vshrl.u32 %v1018, 7
      %v1020 = vsub.s32 %v1017, %v1019
      %v1021 = vrot.slane %v993, %v1020
      %v1022 = vcombine.low %v1000, %v1007
      %v1023 = vcombine.high %v1000, %v1007
      %v1024 = vcombine.low %v1014, %v1021
      %v1025 = vcombine.high %v1014, %v1021
      %v1027 = vunpack.c.l.s4 1966171168
      %v1028 = vunpack.c.0.s8 %v1027
      %v1029 = vlaneseq
      %v1030 = vshrl.u32 %v1029, 7
      %v1031 = vsub.s32 %v1028, %v1030
      %v1032 = vrot.slane %v1022, %v1031
      %v1034 = vunpack.c.l.s4 1966171168
      %v1035 = vunpack.c.0.s8 %v1034
      %v1036 = vlaneseq
      %v1037 = vshrl.u32 %v1036, 7
      %v1038 = vsub.s32 %v1035, %v1037
      %v1039 = vrot.slane %v1023, %v1038
      %v1041 = vunpack.c.l.s4 1966171168
      %v1042 = vunpack.c.0.s8 %v1041
      %v1043 = vlaneseq
      %v1044 = vshrl.u32 %v1043, 7
      %v1045 = vsub.s32 %v1042, %v1044
      %v1046 = vrot.slane %v1024, %v1045
      %v1048 = vunpack.c.l.s4 1966171168
      %v1049 = vunpack.c.0.s8 %v1048
      %v1050 = vlaneseq
      %v1051 = vshrl.u32 %v1050, 7
      %v1052 = vsub.s32 %v1049, %v1051
      %v1053 = vrot.slane %v1025, %v1052
      %v1054 = vcombine.low %v1032, %v1046
      %v1055 = vcombine.low %v1039, %v1053
      %v1057 = vunpack.c.l.s4 1966171168
      %v1058 = vunpack.c.0.s8 %v1057
      %v1059 = vlaneseq
      %v1060 = vshrl.u32 %v1059, 7
      %v1061 = vsub.s32 %v1058, %v1060
      %v1062 = vrot.slane %v865, %v1061
      %v1063 = vcombine.high %v1062, %v1062
      %v1065 = vunpack.c.l.s4 1966171168
      %v1066 = vunpack.c.0.s8 %v1065
      %v1067 = vlaneseq
      %v1068 = vshrl.u32 %v1067, 7
      %v1069 = vsub.s32 %v1066, %v1068
      %v1070 = vrot.slane %v1062, %v1069
      %v1072 = vunpack.c.l.s4 1966171168
      %v1073 = vunpack.c.0.s8 %v1072
      %v1074 = vlaneseq
      %v1075 = vshrl.u32 %v1074, 7
      %v1076 = vsub.s32 %v1073, %v1075
      %v1077 = vrot.slane %v1063, %v1076
      %v1078 = vcombine.low %v866, %v867
      %v1079 = vcombine.low %v868, %v869
      %v1080 = vcombine.low %v870, %v871
      %v1081 = vcombine.low %v872, %v873
      %v1083 = vunpack.c.l.s4 1966171168
      %v1084 = vunpack.c.0.s8 %v1083
      %v1085 = vlaneseq
      %v1086 = vshrl.u32 %v1085, 7
      %v1087 = vsub.s32 %v1084, %v1086
      %v1088 = vrot.slane %v1078, %v1087
      %v1090 = vunpack.c.l.s4 1966171168
      %v1091 = vunpack.c.0.s8 %v1090
      %v1092 = vlaneseq
      %v1093 = vshrl.u32 %v1092, 7
      %v1094 = vsub.s32 %v1091, %v1093
      %v1095 = vrot.slane %v1079, %v1094
      %v1097 = vunpack.c.l.s4 1966171168
      %v1098 = vunpack.c.0.s8 %v1097
      %v1099 = vlaneseq
      %v1100 = vshrl.u32 %v1099, 7
      %v1101 = vsub.s32 %v1098, %v1100
      %v1102 = vrot.slane %v1080, %v1101
      %v1104 = vunpack.c.l.s4 1966171168
      %v1105 = vunpack.c.0.s8 %v1104
      %v1106 = vlaneseq
      %v1107 = vshrl.u32 %v1106, 7
      %v1108 = vsub.s32 %v1105, %v1107
      %v1109 = vrot.slane %v1081, %v1108
      %v1110 = vcombine.low %v1088, %v1095
      %v1111 = vcombine.high %v1088, %v1095
      %v1112 = vcombine.low %v1102, %v1109
      %v1113 = vcombine.high %v1102, %v1109
      %v1115 = vunpack.c.l.s4 1966171168
      %v1116 = vunpack.c.0.s8 %v1115
      %v1117 = vlaneseq
      %v1118 = vshrl.u32 %v1117, 7
      %v1119 = vsub.s32 %v1116, %v1118
      %v1120 = vrot.slane %v1110, %v1119
      %v1122 = vunpack.c.l.s4 1966171168
      %v1123 = vunpack.c.0.s8 %v1122
      %v1124 = vlaneseq
      %v1125 = vshrl.u32 %v1124, 7
      %v1126 = vsub.s32 %v1123, %v1125
      %v1127 = vrot.slane %v1111, %v1126
      %v1129 = vunpack.c.l.s4 1966171168
      %v1130 = vunpack.c.0.s8 %v1129
      %v1131 = vlaneseq
      %v1132 = vshrl.u32 %v1131, 7
      %v1133 = vsub.s32 %v1130, %v1132
      %v1134 = vrot.slane %v1112, %v1133
      %v1136 = vunpack.c.l.s4 1966171168
      %v1137 = vunpack.c.0.s8 %v1136
      %v1138 = vlaneseq
      %v1139 = vshrl.u32 %v1138, 7
      %v1140 = vsub.s32 %v1137, %v1139
      %v1141 = vrot.slane %v1113, %v1140
      %v1142 = vcombine.low %v1120, %v1134
      %v1143 = vcombine.low %v1127, %v1141
      %v1145 = vunpack.c.l.s4 1966171168
      %v1146 = vunpack.c.0.s8 %v1145
      %v1147 = vlaneseq
      %v1148 = vshrl.u32 %v1147, 7
      %v1149 = vsub.s32 %v1146, %v1148
      %v1150 = vrot.slane %v874, %v1149
      %v1151 = vcombine.high %v1150, %v1150
      %v1153 = vunpack.c.l.s4 1966171168
      %v1154 = vunpack.c.0.s8 %v1153
      %v1155 = vlaneseq
      %v1156 = vshrl.u32 %v1155, 7
      %v1157 = vsub.s32 %v1154, %v1156
      %v1158 = vrot.slane %v1150, %v1157
      %v1160 = vunpack.c.l.s4 1966171168
      %v1161 = vunpack.c.0.s8 %v1160
      %v1162 = vlaneseq
      %v1163 = vshrl.u32 %v1162, 7
      %v1164 = vsub.s32 %v1161, %v1163
      %v1165 = vrot.slane %v1151, %v1164
      %vm1178 = vcmask 1040384
      %v1179 = vsel %vm1178, %v982, 0.0
      %v1180 = vadd.f32 %v966, %v1179
      %v1181 = vrot.slane %v1180, 4
      %v1182 = vadd.f32 %v1180, %v1181
      %v1183 = vrot.slane %v1182, 2
      %v1184 = vadd.f32 %v1182, %v1183
      %v1185 = vrot.slane %v1184, 1
      %v1186 = vadd.f32 %v1184, %v1185
      %v1187 = vsel %vm1178, %v989, 0.0
      %v1188 = vadd.f32 %v967, %v1187
      %v1189 = vrot.slane %v1188, 4
      %v1190 = vadd.f32 %v1188, %v1189
      %v1191 = vrot.slane %v1190, 2
      %v1192 = vadd.f32 %v1190, %v1191
      %v1193 = vrot.slane %v1192, 1
      %v1194 = vadd.f32 %v1192, %v1193
      %v1195 = vsel %vm1178, %v1070, 0.0
      %v1196 = vadd.f32 %v1054, %v1195
      %v1197 = vrot.slane %v1196, 4
      %v1198 = vadd.f32 %v1196, %v1197
      %v1199 = vrot.slane %v1198, 2
      %v1200 = vadd.f32 %v1198, %v1199
      %v1201 = vrot.slane %v1200, 1
      %v1202 = vadd.f32 %v1200, %v1201
      %v1203 = vsel %vm1178, %v1077, 0.0
      %v1204 = vadd.f32 %v1055, %v1203
      %v1205 = vrot.slane %v1204, 4
      %v1206 = vadd.f32 %v1204, %v1205
      %v1207 = vrot.slane %v1206, 2
      %v1208 = vadd.f32 %v1206, %v1207
      %v1209 = vrot.slane %v1208, 1
      %v1210 = vadd.f32 %v1208, %v1209
      %v1211 = vsel %vm1178, %v1158, 0.0
      %v1212 = vadd.f32 %v1142, %v1211
      %v1213 = vrot.slane %v1212, 4
      %v1214 = vadd.f32 %v1212, %v1213
      %v1215 = vrot.slane %v1214, 2
      %v1216 = vadd.f32 %v1214, %v1215
      %v1217 = vrot.slane %v1216, 1
      %v1218 = vadd.f32 %v1216, %v1217
      %v1219 = vsel %vm1178, %v1165, 0.0
      %v1220 = vadd.f32 %v1143, %v1219
      %v1221 = vrot.slane %v1220, 4
      %v1222 = vadd.f32 %v1220, %v1221
      %v1223 = vrot.slane %v1222, 2
      %v1224 = vadd.f32 %v1222, %v1223
      %v1225 = vrot.slane %v1224, 1
      %v1226 = vadd.f32 %v1224, %v1225
      %v1227 = vrcp.pop %v421
      %v1228 = vrcp.pop %v431
      %v1229 = vmul.f32 %v1186, %v1227
      %v1230 = vmul.f32 %v1194, %v1228
      %v1231 = vmul.f32 %v1202, %v1227
      %v1232 = vmul.f32 %v1210, %v1228
      %v1233 = vmul.f32 %v1218, %v1227
      %v1234 = vmul.f32 %v1226, %v1228
      %v1241 = vcombine.low %v1229, %v1230
      %v1242 = vcombine.low %v1231, %v1232
      %v1243 = vcombine.low %v1233, %v1234
      %v1244 = vrot.slane %v1242, 7
      %vm1245 = vcmask 1041409
      %v1246 = vsel %vm1245, %v1244, %v1241
      %vm1247 = vcmask 1045509
      %v1248 = vsel %vm1247, %v1244, %v1246
      %v1249 = vrot.slane %v1243, 6
      %vm1250 = vcmask 1042434
      %v1251 = vsel %vm1250, %v1249, %v1248
      %vm1252 = vcmask 1046534
      %v1253 = vsel %vm1252, %v1249, %v1251
      %v1255 = vsub.f32 %v254, %v1253
      %1256 = vst [vmem:[%s244] sm:$0x77] %v1255
      %s1257 = smul.u32 2, %s19
      %p1258 = scmp.lt.s32.totalorder %s18, 1
      %s1259 = scalar_select %p1258, %s18, 1
      %p1260 = scmp.lt.s32.totalorder %s1257, 1
      %s1261 = scalar_select %p1260, %s1257, 1
      %s1262 = smul.addr %s1259, 2
      %s1263 = sadd.s32 %s1261, %s1262
      %s1264 = smul.addr %s1263, 4
      %s1265 = scalar_lea.vmem %s3, %s1264
      // Predicated region
      $region33: #{tpu_custom_call.1} parent=31 // pred_check
        %p1266 = pneg %p123
      $region34: #{tpu_custom_call.1} parent=31 // pred_check_branch
        %1268 = sbr.rel (%p1266) target = $region36
      $region35: #{tpu_custom_call.1} parent=31 // pred_region
        %s1269 = smul.u32 2, %s19
      $region36: #{tpu_custom_call.1} parent=31 // pred_fallthru
        _
    $region32: #{tpu_custom_call.1} parent=5 // pred_fallthru
      _
    %p1270 = scmp.le.s32.totalorder 2, %s9
    // Predicated region
    $region37: #{tpu_custom_call.1} parent=5 // pred_check
      %p1271 = pneg %p1270
    $region38: #{tpu_custom_call.1} parent=5 // pred_check_branch
      %1273 = sbr.rel (%p1271) target = $region40
    $region39: #{tpu_custom_call.1} parent=5 // pred_region
      %s1274 = ssub.s32 %s9, 2
      // Predicated region
      $region41: #{tpu_custom_call.1} parent=39 // pred_check
        %p1275 = pneg %p129
      $region42: #{tpu_custom_call.1} parent=39 // pred_check_branch
        %1277 = sbr.rel (%p1275) target = $region44
      $region43: #{tpu_custom_call.1} parent=39 // pred_region
        %s1278 = smul.u32 2, %s21
        %p1279 = scmp.lt.s32.totalorder %s20, 1
        %s1280 = scalar_select %p1279, %s20, 1
        %p1281 = scmp.lt.s32.totalorder %s1278, 1
        %s1282 = scalar_select %p1281, %s1278, 1
        %s1283 = smul.addr %s1280, 2
        %s1284 = sadd.s32 %s1282, %s1283
        %s1285 = smul.addr %s1284, 4
        %s1286 = scalar_lea.vmem %s3, %s1285
      $region44: #{tpu_custom_call.1} parent=39 // pred_fallthru
        _
    $region40: #{tpu_custom_call.1} parent=5 // pred_fallthru
      _
  $region6: #{tpu_custom_call.1} parent=0 // loop_footer
    %s13 = sadd.s32 1, %s9
  $region7: #{tpu_custom_call.1} parent=0 // loop_footer_branch
    %8 = sbr.rel target = $region3
  $region8: #{tpu_custom_call.1} parent=0 // loop_exit
    _

</llo_original>
